<compile_context>
chip_gen: v7x
topology: tpu7x:2x2x1
jax: 0.10.0
libtpu: 0.0.40
codegen_flags: <defaults>
</compile_context>

<pallas_src>
import functools
import math

import jax
import jax.numpy as jnp
from jax import lax
from jax.experimental import pallas as pl
from jax.experimental.pallas import tpu as pltpu


def _vqvae_loss_kernel(*refs, scale, if_mask, group, write_nll,
                       total_rows, block_rows, needs_row_mask):
    """One (TM, W) tile of the flattened loss.

    refs = sample, target, [mask], [expand], [nll_out], wsum_out, acc_scratch
    """
    it = iter(refs)
    sample_ref = next(it)
    target_ref = next(it)
    mask_ref = next(it) if if_mask else None
    expand_ref = next(it) if (if_mask and group > 1) else None
    nll_ref = next(it) if write_nll else None
    wsum_ref = next(it)
    acc_ref = next(it)

    c = pl.program_id(0)                 # core (leading "parallel" axis)
    s = pl.program_id(1)                 # step within this core ("arbitrary")
    n_s = pl.num_programs(1)
    b = c * n_s + s                      # UNCLAMPED logical row-block id

    # Init the per-core lane-wide accumulator on this core's first step.
    @pl.when(s == 0)
    def _init():
        acc_ref[...] = jnp.zeros_like(acc_ref)

    # Elementwise squared error on the VPU, in f32.
    diff = sample_ref[...].astype(jnp.float32) - target_ref[...].astype(jnp.float32)
    rec = diff * diff                    # (TM, W) f32

    if if_mask:
        m = mask_ref[...].astype(jnp.float32)        # (TM, G)
        if group == 1:
            rec = rec * m                # (TM, 1) broadcast over the lane axis
        else:
            # Expand each folded position over its D features with the resident
            # one-hot matrix on the (otherwise idle) MXU: (TM,G)@(G,G*D).
            # TODO(synk): bf16 operands would halve MXU passes on v5e but are
            # only exact for binary masks; kept f32 for arbitrary mask values.
            rec = rec * jnp.dot(m, expand_ref[...],
                                preferred_element_type=jnp.float32)

    if write_nll:
        # Partial-block tail stores are masked by Pallas automatically.
        nll_ref[...] = rec.astype(nll_ref.dtype)

    if needs_row_mask:
        # (TM, 1) row-index compare: zeroes ragged-tail rows and the (at most
        # one) redundant clamped block, and blocks NaN/Inf from garbage rows.
        r = lax.broadcasted_iota(jnp.int32, (block_rows, 1), 0)
        rec_s = jnp.where(b * block_rows + r < total_rows, rec, 0.0)
    else:
        rec_s = rec

    # Lane-wide f32 partial sums; the cross-lane reduce is deferred to finalize.
    acc_ref[...] += jnp.sum(rec_s, axis=0, keepdims=True)

    # Finalize once per core: cross-lane reduce, apply nll_loss_weight / N
    # (baked into `scale` with the TRUE batch size), write this core's block.
    @pl.when(s == n_s - 1)
    def _finalize():
        total = jnp.sum(acc_ref[...]) * jnp.float32(scale)
        wsum_ref[...] = jnp.broadcast_to(total, (8, 128))


def vqvae_loss(sample, target_sample, mask=None, if_mask=False,
               nll_loss_weight=1.0, return_nll_tensor=True,
               target_block_bytes=None, split_min_odd_blocks=16):
    assert sample.shape == target_sample.shape
    N, L, D = sample.shape
    M = N * L
    isz = sample.dtype.itemsize
    write_nll = bool(return_nll_tensor)
    if if_mask:
        assert mask is not None and mask.shape == (N, L)

    # ---- generation-aware VMEM budget --------------------------------------
    try:
        info = pltpu.get_tpu_info()
        vmem_phys = int(getattr(info, "vmem_capacity_bytes", 64 << 20))
    except Exception:
        vmem_phys = 64 << 20                      # conservative fallback
    vmem_limit = min((vmem_phys * 3) // 4, 96 << 20)   # ~48 MiB v7x, ~96 MiB v5e/v6e

    # ---- lane-dense folded layout ------------------------------------------
    # Fold G consecutive sequence positions into the lane axis so the stored
    # last dim (W = G*D) is a multiple of 128 (unmasked vst) whenever possible.
    if D % 128 == 0:
        G = 1
    else:
        G = 128 // math.gcd(D, 128)
        # Guard: the (G, G*D) expand matrix must stay small (v7x has 64 MiB VMEM).
        if M % G != 0 or (if_mask and G * G * D * 4 > (2 << 20)):
            G = 1                                 # fallback: correct, lane-sparse
    R = M // G
    W = G * D

    sample2 = sample.reshape(R, W)                # contiguous reshapes: no copies
    target2 = target_sample.reshape(R, W)

    # ---- row-tile size from actual itemsize & the VMEM budget ---------------
    n_streams = 2 + (1 if write_nll else 0)
    fixed = (2 << 20) + 32 * W                    # slack + (1, W) f32 accumulator
    if if_mask and G > 1:
        fixed += 2 * G * W * 4                    # resident expand (worst case)
    bytes_per_row = W * (2 * n_streams * isz + 2 * 4)   # dbl-buffered streams + f32 temps
    if if_mask:
        bytes_per_row += 2 * G * 4                # mask stream
    if target_block_bytes is not None:
        tm_cap = (target_block_bytes // (W * isz)) // 8 * 8
    else:
        tm_budget = ((vmem_limit - fixed) * 7 // 8) // bytes_per_row
        tm_stream = (8 << 20) // (W * isz)        # cap per-stream block ~8 MiB
        tm_cap = min(tm_budget, tm_stream) // 8 * 8
    tm_cap = max(8, tm_cap)
    TM = R if R <= tm_cap else tm_cap
    nblocks = (R + TM - 1) // TM

    # ---- split row blocks across both TensorCores (v7x megacore) ------------
    # One redundant (clamped) step at most; skipped only when its relative HBM
    # overhead would be large on single-TC generations.
    if nblocks >= 2 and (nblocks % 2 == 0 or nblocks >= split_min_odd_blocks):
        ncores = 2
    else:
        ncores = 1
    S = (nblocks + ncores - 1) // ncores
    if ncores * S == nblocks:
        def row_block(c, s):
            return c * S + s
    else:
        last = nblocks - 1
        def row_block(c, s):                      # clamp the single redundant step
            return jnp.minimum(c * S + s, last)
    needs_row_mask = (ncores * S * TM != R)

    scale = (float(nll_loss_weight) if nll_loss_weight is not None else 1.0) / float(N)
    kernel = functools.partial(
        _vqvae_loss_kernel, scale=scale, if_mask=bool(if_mask), group=G,
        write_nll=write_nll, total_rows=R, block_rows=TM,
        needs_row_mask=needs_row_mask)

    inputs = [sample2, target2]
    in_specs = [pl.BlockSpec((TM, W), lambda c, s: (row_block(c, s), 0)),
                pl.BlockSpec((TM, W), lambda c, s: (row_block(c, s), 0))]
    if if_mask:
        mask2 = mask.astype(jnp.float32).reshape(R, G)
        inputs.append(mask2)
        in_specs.append(pl.BlockSpec((TM, G), lambda c, s: (row_block(c, s), 0)))
        if G > 1:
            # One-hot (G, W) expand, built once here (loop-invariant, resident).
            g_row = lax.broadcasted_iota(jnp.int32, (G, W), 0)
            g_col = lax.broadcasted_iota(jnp.int32, (G, W), 1) // D
            expand = (g_row == g_col).astype(jnp.float32)
            inputs.append(expand)
            in_specs.append(pl.BlockSpec((G, W), lambda c, s: (0, 0)))

    # Per-core partial sums: each core owns an (8, 128) lane-dense block.
    wsum_shape = jax.ShapeDtypeStruct((8 * ncores, 128), jnp.float32)
    wsum_spec = pl.BlockSpec((8, 128), lambda c, s: (c, 0))
    if write_nll:
        out_shape = (jax.ShapeDtypeStruct((R, W), sample.dtype), wsum_shape)
        out_specs = (pl.BlockSpec((TM, W), lambda c, s: (row_block(c, s), 0)),
                     wsum_spec)
    else:
        out_shape = (wsum_shape,)
        out_specs = (wsum_spec,)

    elems = M * D
    cost = pl.CostEstimate(
        flops=(4 if if_mask else 3) * elems,
        transcendentals=0,
        bytes_accessed=elems * isz * n_streams
                       + (M * 4 if if_mask else 0)
                       + 8 * ncores * 128 * 4)

    outs = pl.pallas_call(
        kernel,
        grid=(ncores, S),
        out_shape=out_shape,
        in_specs=in_specs,
        out_specs=out_specs,
        scratch_shapes=[pltpu.VMEM((1, W), jnp.float32)],
        compiler_params=pltpu.CompilerParams(
            dimension_semantics=("parallel", "arbitrary"),
            vmem_limit_bytes=int(vmem_limit)),
        cost_estimate=cost,
    )(*inputs)

    if write_nll:
        nll2, wsum = outs
        nll = nll2.reshape(N, L, D)
    else:
        (wsum,) = outs
        nll = None
    weighted = jnp.sum(wsum[0::8, 0])             # sum the per-core partials
    return dict(nll_loss=nll, weighted_nll_loss=weighted)


def _reference(sample, target_sample, mask, if_mask, nll_loss_weight):
    rec = (sample.astype(jnp.float32) - target_sample.astype(jnp.float32)) ** 2
    nll = rec * mask.astype(jnp.float32)[:, :, None] if if_mask else rec
    w = nll if nll_loss_weight is None else nll_loss_weight * nll
    return nll, jnp.sum(w) / sample.shape[0]


if __name__ == "__main__":
    key = jax.random.PRNGKey(0)
    k1, k2, k3, k4, k5, k6, k7, k8 = jax.random.split(key, 8)

    # --- canonical small shape (single block, folded lanes, masked) ----------
    N, L, D = 2, 8, 32
    sample = jax.random.normal(k1, (N, L, D), dtype=jnp.float32)
    target = jax.random.normal(k2, (N, L, D), dtype=jnp.float32)
    mask = (jax.random.uniform(k3, (N, L)) > 0.5).astype(jnp.float32)

    out = vqvae_loss(sample, target, mask=mask, if_mask=True, nll_loss_weight=1.0)
    jax.block_until_ready(out["weighted_nll_loss"])
    ref_nll, ref_w = _reference(sample, target, mask, True, 1.0)
    assert jnp.allclose(out["nll_loss"], ref_nll, atol=1e-5, rtol=1e-5)
    assert jnp.allclose(out["weighted_nll_loss"], ref_w, atol=1e-4, rtol=1e-4)

    # Unmasked (no mask stream at all).
    out2 = vqvae_loss(sample, target, if_mask=False, nll_loss_weight=1.0)
    jax.block_until_ready(out2["weighted_nll_loss"])
    ref_nll2, ref_w2 = _reference(sample, target, mask, False, 1.0)
    assert jnp.allclose(out2["nll_loss"], ref_nll2, atol=1e-5, rtol=1e-5)
    assert jnp.allclose(out2["weighted_nll_loss"], ref_w2, atol=1e-4, rtol=1e-4)

    # Reduction-only variant (skips the nll write stream), weight=None path.
    out3 = vqvae_loss(sample, target, mask=mask, if_mask=True,
                      nll_loss_weight=None, return_nll_tensor=False)
    jax.block_until_ready(out3["weighted_nll_loss"])
    _, ref_w3 = _reference(sample, target, mask, True, None)
    assert out3["nll_loss"] is None
    assert jnp.allclose(out3["weighted_nll_loss"], ref_w3, atol=1e-4, rtol=1e-4)

    # --- multi-block grid + ragged tail, single-core path --------------------
    N2, L2 = 2, 40                        # R = 20, TM forced to 8 -> 3 blocks
    sample_b = jax.random.normal(k4, (N2, L2, D), dtype=jnp.float32)
    target_b = jax.random.normal(k5, (N2, L2, D), dtype=jnp.float32)
    mask_b = (jax.random.uniform(k6, (N2, L2)) > 0.5).astype(jnp.float32)

    out4 = vqvae_loss(sample_b, target_b, mask=mask_b, if_mask=True,
                      nll_loss_weight=0.5, target_block_bytes=4096)
    jax.block_until_ready(out4["weighted_nll_loss"])
    ref_nll4, ref_w4 = _reference(sample_b, target_b, mask_b, True, 0.5)
    assert jnp.allclose(out4["nll_loss"], ref_nll4, atol=1e-5, rtol=1e-5)
    assert jnp.allclose(out4["weighted_nll_loss"], ref_w4, atol=1e-4, rtol=1e-4)

    # --- even block count -> two-core split path ------------------------------
    N3, L3 = 2, 64                        # R = 32, TM = 16 -> 2 blocks, 2 cores
    sample_c = jax.random.normal(k7, (N3, L3, D), dtype=jnp.float32)
    target_c = jax.random.normal(k8, (N3, L3, D), dtype=jnp.float32)
    out5 = vqvae_loss(sample_c, target_c, if_mask=False, nll_loss_weight=2.0,
                      target_block_bytes=8192)
    jax.block_until_ready(out5["weighted_nll_loss"])
    ref_nll5, ref_w5 = _reference(sample_c, target_c, mask_b, False, 2.0)
    assert jnp.allclose(out5["nll_loss"], ref_nll5, atol=1e-5, rtol=1e-5)
    assert jnp.allclose(out5["weighted_nll_loss"], ref_w5, atol=1e-4, rtol=1e-4)

    # --- odd block count -> two-core split with a clamped redundant step ------
    out6 = vqvae_loss(sample_b, target_b, mask=mask_b, if_mask=True,
                      nll_loss_weight=0.5, target_block_bytes=4096,
                      split_min_odd_blocks=3)
    jax.block_until_ready(out6["weighted_nll_loss"])
    assert jnp.allclose(out6["nll_loss"], ref_nll4, atol=1e-5, rtol=1e-5)
    assert jnp.allclose(out6["weighted_nll_loss"], ref_w4, atol=1e-4, rtol=1e-4)

    # --- D multiple of 128 (G == 1 masked lane-broadcast path) ----------------
    D2 = 128
    sample_d = jax.random.normal(k1, (N, L, D2), dtype=jnp.float32)
    target_d = jax.random.normal(k2, (N, L, D2), dtype=jnp.float32)
    out7 = vqvae_loss(sample_d, target_d, mask=mask, if_mask=True,
                      nll_loss_weight=1.0)
    jax.block_until_ready(out7["weighted_nll_loss"])
    ref_nll7, ref_w7 = _reference(sample_d, target_d, mask, True, 1.0)
    assert jnp.allclose(out7["nll_loss"], ref_nll7, atol=1e-5, rtol=1e-5)
    assert jnp.allclose(out7["weighted_nll_loss"], ref_w7, atol=1e-4, rtol=1e-4)

    print("KERNEL_OK")
</pallas_src>

<mosaic_0001>
module attributes {stable_mosaic.version = 11 : i64} {
  func.func @_vqvae_loss_kernel(%arg0: i32, %arg1: i32, %arg2: memref<4x128xf32, #tpu.memory_space<vmem>>, %arg3: memref<4x128xf32, #tpu.memory_space<vmem>>, %arg4: memref<4x4xf32, #tpu.memory_space<vmem>>, %arg5: memref<4x128xf32, #tpu.memory_space<vmem>>, %arg6: memref<4x128xf32, #tpu.memory_space<vmem>>, %arg7: memref<8x128xf32, #tpu.memory_space<vmem>>, %arg8: memref<1x128xf32, #tpu.memory_space<vmem>>) attributes {dimension_semantics = [#tpu.dimension_semantics<parallel>, #tpu.dimension_semantics<arbitrary>], iteration_bounds = array<i64: 1, 1>, scalar_prefetch = 0 : i64, scratch_operands = 1 : i64, tpu.core_type = #tpu.core_type<tc>, window_params = [{transform_indices = @transform_0, window_bounds = array<i64: 4, 128>}, {transform_indices = @transform_1, window_bounds = array<i64: 4, 128>}, {transform_indices = @transform_2, window_bounds = array<i64: 4, 4>}, {pipeline_mode = #tpu.pipeline_mode<synchronous>, transform_indices = @transform_3, window_bounds = array<i64: 4, 128>}, {transform_indices = @transform_4, window_bounds = array<i64: 4, 128>}, {transform_indices = @transform_5, window_bounds = array<i64: 8, 128>}]} {
    %c0_i32 = arith.constant 0 : i32
    %0 = arith.cmpi eq, %arg1, %c0_i32 : i32
    %1 = arith.extui %0 : i1 to i32
    %c0_i32_0 = arith.constant 0 : i32
    %2 = arith.cmpi ne, %1, %c0_i32_0 : i32
    scf.if %2 {
      %cst_17 = arith.constant 0.000000e+00 : f32
      %20 = vector.broadcast %cst_17 : f32 to vector<1x128xf32>
      %c0_18 = arith.constant 0 : index
      %c0_19 = arith.constant 0 : index
      %21 = vector.load %arg8[%c0_18, %c0_19] : memref<1x128xf32, #tpu.memory_space<vmem>>, vector<1x128xf32>
      tpu.vector_store %arg8[%c0_18, %c0_19], %20 {strides = array<i32>} : memref<1x128xf32, #tpu.memory_space<vmem>>, vector<1x128xf32>,
    } else {
    }
    %c0 = arith.constant 0 : index
    %c0_1 = arith.constant 0 : index
    %3 = vector.load %arg2[%c0, %c0_1] : memref<4x128xf32, #tpu.memory_space<vmem>>, vector<4x128xf32>
    %c0_2 = arith.constant 0 : index
    %c0_3 = arith.constant 0 : index
    %4 = vector.load %arg3[%c0_2, %c0_3] : memref<4x128xf32, #tpu.memory_space<vmem>>, vector<4x128xf32>
    %5 = arith.subf %3, %4 : vector<4x128xf32>
    %6 = arith.mulf %5, %5 : vector<4x128xf32>
    %c0_4 = arith.constant 0 : index
    %c0_5 = arith.constant 0 : index
    %7 = vector.load %arg4[%c0_4, %c0_5] : memref<4x4xf32, #tpu.memory_space<vmem>>, vector<4x4xf32>
    %c0_6 = arith.constant 0 : index
    %c0_7 = arith.constant 0 : index
    %8 = vector.load %arg5[%c0_6, %c0_7] : memref<4x128xf32, #tpu.memory_space<vmem>>, vector<4x128xf32>
    %cst = arith.constant dense<0.000000e+00> : vector<4x128xf32>
    %9 = tpu.matmul %7, %8, %cst {dimension_numbers = #tpu.dot_dimension_numbers<[1], [0], [0], [1], [0, 0, 1, 1], [], []>} : vector<4x4xf32>, vector<4x128xf32>, vector<4x128xf32> -> vector<4x128xf32>
    %10 = arith.mulf %6, %9 : vector<4x128xf32>
    %c0_8 = arith.constant 0 : index
    %c0_9 = arith.constant 0 : index
    %11 = vector.load %arg6[%c0_8, %c0_9] : memref<4x128xf32, #tpu.memory_space<vmem>>, vector<4x128xf32>
    tpu.vector_store %arg6[%c0_8, %c0_9], %10 {strides = array<i32>} : memref<4x128xf32, #tpu.memory_space<vmem>>, vector<4x128xf32>,
    %c0_10 = arith.constant 0 : index
    %c0_11 = arith.constant 0 : index
    %12 = vector.load %arg8[%c0_10, %c0_11] : memref<1x128xf32, #tpu.memory_space<vmem>>, vector<1x128xf32>
    %cst_12 = arith.constant dense<0.000000e+00> : vector<128xf32>
    %13 = vector.multi_reduction <add>, %10, %cst_12 [0] : vector<4x128xf32> to vector<128xf32>
    %14 = vector.shape_cast %13 : vector<128xf32> to vector<1x128xf32>
    %15 = arith.addf %12, %14 : vector<1x128xf32>
    %c0_13 = arith.constant 0 : index
    %c0_14 = arith.constant 0 : index
    %16 = vector.load %arg8[%c0_13, %c0_14] : memref<1x128xf32, #tpu.memory_space<vmem>>, vector<1x128xf32>
    tpu.vector_store %arg8[%c0_13, %c0_14], %15 {strides = array<i32>} : memref<1x128xf32, #tpu.memory_space<vmem>>, vector<1x128xf32>,
    %c0_i32_15 = arith.constant 0 : i32
    %17 = arith.cmpi eq, %arg1, %c0_i32_15 : i32
    %18 = arith.extui %17 : i1 to i32
    %c0_i32_16 = arith.constant 0 : i32
    %19 = arith.cmpi ne, %18, %c0_i32_16 : i32
    scf.if %19 {
      %c0_17 = arith.constant 0 : index
      %c0_18 = arith.constant 0 : index
      %20 = vector.load %arg8[%c0_17, %c0_18] : memref<1x128xf32, #tpu.memory_space<vmem>>, vector<1x128xf32>
      %21 = vector.shape_cast %20 : vector<1x128xf32> to vector<1x1x128xf32>
      %cst_19 = arith.constant dense<0.000000e+00> : vector<1xf32>
      %22 = vector.multi_reduction <add>, %21, %cst_19 [1, 2] : vector<1x1x128xf32> to vector<1xf32>
      %23 = vector.shape_cast %22 : vector<1xf32> to vector<1x1x1xf32>
      %24 = vector.extract %23[0, 0, 0] : f32 from vector<1x1x1xf32>
      %cst_20 = arith.constant 5.000000e-01 : f32
      %25 = arith.mulf %24, %cst_20 : f32
      %26 = vector.broadcast %25 : f32 to vector<8x128xf32>
      %c0_21 = arith.constant 0 : index
      %c0_22 = arith.constant 0 : index
      %27 = vector.load %arg7[%c0_21, %c0_22] : memref<8x128xf32, #tpu.memory_space<vmem>>, vector<8x128xf32>
      tpu.vector_store %arg7[%c0_21, %c0_22], %26 {strides = array<i32>} : memref<8x128xf32, #tpu.memory_space<vmem>>, vector<8x128xf32>,
    } else {
    }
    return
  }
  func.func @transform_0(%arg0: i32, %arg1: i32) -> (i32, i32) {
    %c1_i32 = arith.constant 1 : i32
    %0 = arith.muli %arg0, %c1_i32 : i32
    %1 = arith.addi %0, %arg1 : i32
    %c0_i32 = arith.constant 0 : i32
    %c0_i32_0 = arith.constant 0 : i32
    return %1, %c0_i32 : i32, i32
  }
  func.func @transform_1(%arg0: i32, %arg1: i32) -> (i32, i32) {
    %c1_i32 = arith.constant 1 : i32
    %0 = arith.muli %arg0, %c1_i32 : i32
    %1 = arith.addi %0, %arg1 : i32
    %c0_i32 = arith.constant 0 : i32
    %c0_i32_0 = arith.constant 0 : i32
    return %1, %c0_i32 : i32, i32
  }
  func.func @transform_2(%arg0: i32, %arg1: i32) -> (i32, i32) {
    %c1_i32 = arith.constant 1 : i32
    %0 = arith.muli %arg0, %c1_i32 : i32
    %1 = arith.addi %0, %arg1 : i32
    %c0_i32 = arith.constant 0 : i32
    %c0_i32_0 = arith.constant 0 : i32
    return %1, %c0_i32 : i32, i32
  }
  func.func @transform_3(%arg0: i32, %arg1: i32) -> (i32, i32) {
    %c0_i32 = arith.constant 0 : i32
    %c0_i32_0 = arith.constant 0 : i32
    %c0_i32_1 = arith.constant 0 : i32
    return %c0_i32, %c0_i32_0 : i32, i32
  }
  func.func @transform_4(%arg0: i32, %arg1: i32) -> (i32, i32) {
    %c1_i32 = arith.constant 1 : i32
    %0 = arith.muli %arg0, %c1_i32 : i32
    %1 = arith.addi %0, %arg1 : i32
    %c0_i32 = arith.constant 0 : i32
    %c0_i32_0 = arith.constant 0 : i32
    return %1, %c0_i32 : i32, i32
  }
  func.func @transform_5(%arg0: i32, %arg1: i32) -> (i32, i32) {
    %c0_i32 = arith.constant 0 : i32
    %c0_i32_0 = arith.constant 0 : i32
    return %arg0, %c0_i32 : i32, i32
  }
}

</mosaic_0001>

<llo_original>
// kernel: tpu_custom_call.1
$region0: #{tpu_custom_call.1}
  #allocation0 [shape = 'u32[]', space=smem, size = 0x4, offset = 0x4, fixed_abs, tag = 'smem constant byte address 0x4 - core index']
  #allocation1 [shape = 'u32[144,128]{1,0:T(1,128)}', space=vmem, size = 0x12000, scoped, tag = 'internal scratch']
  #allocation2 [shape = 'f32[1,128]{1,0:T(1,128)}', space=vmem, size = 0x200, scoped, tag = 'scratch operand']
  %s0 = inlined_call_operand.hbm [shape: f32[4,128], index: 0, kind: input, shape index: {}]
  %s1 = inlined_call_operand.hbm [shape: f32[4,128], index: 1, kind: input, shape index: {}]
  %s2 = inlined_call_operand.vmem [shape: f32[4,4], index: 2, kind: input, shape index: {}]
  %s3 = inlined_call_operand.vmem [shape: f32[4,128], index: 3, kind: input, shape index: {}]
  %s4 = inlined_call_operand.hbm [shape: f32[4,128], index: 4, kind: output, shape index: {0}]
  %s5 = inlined_call_operand.hbm [shape: f32[8,128], index: 5, kind: output, shape index: {1}]
  %6 = xla_tuple %s4, %s5
  %s7 = sld [smem:[#allocation0]]
  $region50: #{tpu_custom_call.1} parent=0
    _
  %s9 = ssub.s32 1, %s7
  %s10 = scalar_select 0, %s9, %s7
  $region1: #{tpu_custom_call.1} parent=0
    #allocation3 [shape = 'u8[2048]{0}', space=vmem, size = 0x800, scoped, tag = 'input window, operand 0, single buffered']
    #allocation4 [shape = 's32[1]{0}', space=sflag, size = 0x4, scoped, tag = 'scoped memory for tpu_custom_call.1']
    #allocation5 [shape = 's32[1]{0}', space=sflag, size = 0x4, scoped, tag = 'scoped memory for tpu_custom_call.1']
    #allocation6 [shape = 'u8[2048]{0}', space=vmem, size = 0x800, scoped, tag = 'input window, operand 1, single buffered']
    #allocation7 [shape = 's32[1]{0}', space=sflag, size = 0x4, scoped, tag = 'scoped memory for tpu_custom_call.1']
    #allocation8 [shape = 'u8[2048]{0}', space=vmem, size = 0x800, scoped, tag = 'output window, operand 0, single buffered']
    #allocation9 [shape = 'u8[4096]{0}', space=vmem, size = 0x1000, scoped, tag = 'output window, operand 1, single buffered']
    #allocation10 [shape = 's32[1]{0}', space=sflag, size = 0x4, scoped, tag = 'scoped memory for tpu_custom_call.1']
    %11 = vsyncpa [#allocation4], 0
    %12 = vsyncpa [#allocation7], 0
    %13 = vsyncpa [#allocation5], 0
    %14 = vsyncpa [#allocation10], 0
    // Predicated region
    $region2: #{tpu_custom_call.1} parent=1 // pred_check
      _
    $region3: #{tpu_custom_call.1} parent=1 // pred_check_branch
      %16 = sbr.rel (0) target = $region5
    $region4: #{tpu_custom_call.1} parent=1 // pred_region
      %s17 = sadd.s32 0, 0
      %s19 = ssub.s32 64, 64
      %20 = vsyncadd [#allocation4], %s19
      %s21 = smul.addr %s17, 64
      %s22 = scalar_lea.hbm %s0, %s21
      %s24 = sshll.u32 [#allocation3], 4
      %s25 = int_to_ptr.vmem [resolvable:$true] %s24
      %27 = dma.hbm_to_vmem [thread:$0]  %s22, 64, %s25, [#allocation4]
    $region5: #{tpu_custom_call.1} parent=1 // pred_fallthru
      _
    // Predicated region
    $region6: #{tpu_custom_call.1} parent=1 // pred_check
      _
    $region7: #{tpu_custom_call.1} parent=1 // pred_check_branch
      %29 = sbr.rel (0) target = $region9
    $region8: #{tpu_custom_call.1} parent=1 // pred_region
      %s30 = sadd.s32 0, 0
      %s32 = ssub.s32 64, 64
      %33 = vsyncadd [#allocation7], %s32
      %s34 = smul.addr %s30, 64
      %s35 = scalar_lea.hbm %s1, %s34
      %s37 = sshll.u32 [#allocation6], 4
      %s38 = int_to_ptr.vmem [resolvable:$true] %s37
      %40 = dma.hbm_to_vmem [thread:$0]  %s35, 64, %s38, [#allocation7]
    $region9: #{tpu_custom_call.1} parent=1 // pred_fallthru
      _
    // Predicated region
    $region10: #{tpu_custom_call.1} parent=1 // pred_check
      _
    $region11: #{tpu_custom_call.1} parent=1 // pred_check_branch
      %42 = sbr.rel (0) target = $region13
    $region12: #{tpu_custom_call.1} parent=1 // pred_region
      %s43 = sadd.s32 0, 0
      %p44 = scmp.lt.s32.totalorder %s43, 0
      %s45 = scalar_select %p44, %s43, 0
      %s46 = smul.addr %s45, 4
      %s47 = scalar_lea.vmem %s2, %s46
      %s48 = sadd.s32 0, 0
    $region13: #{tpu_custom_call.1} parent=1 // pred_fallthru
      _
    // Predicated region
    $region14: #{tpu_custom_call.1} parent=1 // pred_check
      _
    $region15: #{tpu_custom_call.1} parent=1 // pred_check_branch
      %50 = sbr.rel (0) target = $region17
    $region16: #{tpu_custom_call.1} parent=1 // pred_region
      _
    $region17: #{tpu_custom_call.1} parent=1 // pred_fallthru
      _
    // Predicated region
    $region18: #{tpu_custom_call.1} parent=1 // pred_check
      _
    $region19: #{tpu_custom_call.1} parent=1 // pred_check_branch
      %52 = sbr.rel (0) target = $region21
    $region20: #{tpu_custom_call.1} parent=1 // pred_region
      %53 = dma.done [#allocation4], 64
    $region21: #{tpu_custom_call.1} parent=1 // pred_fallthru
      _
    // Predicated region
    $region22: #{tpu_custom_call.1} parent=1 // pred_check
      _
    $region23: #{tpu_custom_call.1} parent=1 // pred_check_branch
      %55 = sbr.rel (0) target = $region25
    $region24: #{tpu_custom_call.1} parent=1 // pred_region
      %56 = dma.done [#allocation7], 64
    $region25: #{tpu_custom_call.1} parent=1 // pred_fallthru
      _
    %s57 = sadd.s32 0, 0
    %p58 = scmp.lt.s32.totalorder %s57, 0
    %s59 = scalar_select %p58, %s57, 0
    %s60 = smul.addr %s59, 4
    %s61 = scalar_lea.vmem %s2, %s60
    %s62 = sadd.s32 0, 0
    %s63 = sadd.s32 0, 0
    %s64 = sadd.s32 0, 0
    %p65 = scmp.lt.s32.totalorder %s64, 0
    %s66 = scalar_select %p65, %s64, 0
    %s67 = smul.addr %s66, 4
    %s68 = scalar_lea.vmem %s2, %s67
    %s69 = sadd.s32 0, 0
    %s70 = sadd.s32 0, 0
    %p71 = scmp.eq.s32.totalorder 0, 0
    // Predicated region
    $region26: #{tpu_custom_call.1} parent=1 // pred_check
      %p72 = pneg %p71
    $region27: #{tpu_custom_call.1} parent=1 // pred_check_branch
      %74 = sbr.rel (%p72) target = $region29
    $region28: #{tpu_custom_call.1} parent=1 // pred_region
      %75 = vst [vmem:[#allocation2] sm:$0x1] 0.0
    $region29: #{tpu_custom_call.1} parent=1 // pred_fallthru
      _
    %v76 = vld [vmem:[#allocation3] sm:$0xf]
    %v77 = vld [vmem:[#allocation6] sm:$0xf]
    %v78 = vsub.f32 %v76, %v77
    %v79 = vmul.f32 %v78, %v78
    %v80 = vld [vmem:[%s68] sm:$0xf]
    %v81 = vld [vmem:[%s3] sm:$0xf]
    %vm82 = vcmask 31744
    %v84 = vsel %vm82, %v80, 0
    %vm86 = vcmask 1043456
    %v88 = vsel %vm86, %v81, 0
    %90 = vmatprep.subr.mxu0 0.0
    %91 = vmatpush1.msra.mxu0 %v88
    %92 = vmatprep.subr.mxu0 0.0
    %93 = vmatpush1.msra.mxu0 0.0
    %94 = vmatprep.subr.mxu0 0.0
    %95 = vmatpush1.msra.mxu0 0.0
    %96 = vmatprep.subr.mxu0 0.0
    %97 = vmatpush1.msra.mxu0 0.0
    %98 = vmatprep.subr.mxu0 0.0
    %99 = vmatpush1.msra.mxu0 0.0
    %100 = vmatprep.subr.mxu0 0.0
    %101 = vmatpush1.msra.mxu0 0.0
    %102 = vmatprep.subr.mxu0 0.0
    %103 = vmatpush1.msra.mxu0 0.0
    %104 = vmatprep.subr.mxu0 0.0
    %105 = vmatpush1.msra.mxu0 0.0
    %106 = vmatprep.subr.mxu0 0.0
    %107 = vmatpush1.msra.mxu0 0.0
    %108 = vmatprep.subr.mxu0 0.0
    %109 = vmatpush1.msra.mxu0 0.0
    %110 = vmatprep.subr.mxu0 0.0
    %111 = vmatpush1.msra.mxu0 0.0
    %112 = vmatprep.subr.mxu0 0.0
    %113 = vmatpush1.msra.mxu0 0.0
    %114 = vmatprep.subr.mxu0 0.0
    %115 = vmatpush1.msra.mxu0 0.0
    %116 = vmatprep.subr.mxu0 0.0
    %117 = vmatpush1.msra.mxu0 0.0
    %118 = vmatprep.subr.mxu0 0.0
    %119 = vmatpush1.msra.mxu0 0.0
    %120 = vmatprep.subr.mxu0 0.0
    %121 = vmatpush1.msra.mxu0 0.0
    %122 = vmatprep.subr.mxu0 0.0
    %123 = vmatpush1.msra.mxu0 0.0
    %124 = vmatprep.subr.mxu0 0.0
    %125 = vmatpush1.msra.mxu0 0.0
    %126 = vmatprep.subr.mxu0 0.0
    %127 = vmatpush1.msra.mxu0 0.0
    %128 = vmatprep.subr.mxu0 0.0
    %129 = vmatpush1.msra.mxu0 0.0
    %130 = vmatprep.subr.mxu0 0.0
    %131 = vmatpush1.msra.mxu0 0.0
    %132 = vmatprep.subr.mxu0 0.0
    %133 = vmatpush1.msra.mxu0 0.0
    %134 = vmatprep.subr.mxu0 0.0
    %135 = vmatpush1.msra.mxu0 0.0
    %136 = vmatprep.subr.mxu0 0.0
    %137 = vmatpush1.msra.mxu0 0.0
    %138 = vmatprep.subr.mxu0 0.0
    %139 = vmatpush1.msra.mxu0 0.0
    %140 = vmatprep.subr.mxu0 0.0
    %141 = vmatpush1.msra.mxu0 0.0
    %142 = vmatprep.subr.mxu0 0.0
    %143 = vmatpush1.msra.mxu0 0.0
    %144 = vmatprep.subr.mxu0 0.0
    %145 = vmatpush1.msra.mxu0 0.0
    %146 = vmatprep.subr.mxu0 0.0
    %147 = vmatpush1.msra.mxu0 0.0
    %148 = vmatprep.subr.mxu0 0.0
    %149 = vmatpush1.msra.mxu0 0.0
    %150 = vmatprep.subr.mxu0 0.0
    %151 = vmatpush1.msra.mxu0 0.0
    %152 = vmatprep.subr.mxu0 0.0
    %153 = vmatpush1.msra.mxu0 0.0
    %154 = vmatprep.mubr.f32.mxu0 0.0
    %155 = vmatmul.mubr.f32.gmra.mrb[0].mxu0 %v84
    %v156 = vpop.f32.mrb[0].mxu0
    %v157 = vadd.f32 0.0, %v156
    %v158 = vpop.f32.mrb[0].mxu0
    %159 = vdwg.mxu0
    %v160 = vmul.f32 %v79, %v157
    %161 = vst [vmem:[#allocation8] sm:$0xf] %v160
    %v162 = vld [vmem:[#allocation2] sm:$0x1]
    %v163 = vsel %vm86, %v160, 0.0
    %v164 = vrot.slane %v163, 4
    %v165 = vadd.f32 %v163, %v164
    %v166 = vrot.slane %v165, 2
    %v167 = vadd.f32 %v165, %v166
    %v168 = vrot.slane %v167, 1
    %v169 = vadd.f32 %v167, %v168
    %v170 = vadd.f32 %v162, %v169
    %171 = vst [vmem:[#allocation2] sm:$0x1] %v170
    // Predicated region
    $region30: #{tpu_custom_call.1} parent=1 // pred_check
      %p172 = pneg %p71
    $region31: #{tpu_custom_call.1} parent=1 // pred_check_branch
      %174 = sbr.rel (%p172) target = $region33
    $region32: #{tpu_custom_call.1} parent=1 // pred_region
      %v175 = vld [vmem:[#allocation2] sm:$0x1]
      %vm176 = vcmask 1040384
      %v177 = vsel %vm176, %v175, 0.0
      %178 = vadd.xlane.f32.xlu0 %v177
      %v179 = vpop.xlane.xlu0 %178
      %v180 = vrot.slane %v179, 4
      %v181 = vadd.f32 %v179, %v180
      %v182 = vrot.slane %v181, 2
      %v183 = vadd.f32 %v181, %v182
      %v184 = vrot.slane %v183, 1
      %v185 = vadd.f32 %v183, %v184
      %s186 = vtos %v185
      %s187 = smul.f32 %s186, 0.5
      %v188 = vstv %s187
      %189 = vst [vmem:[#allocation9] sm:$0xff] %v188
    $region33: #{tpu_custom_call.1} parent=1 // pred_fallthru
      _
    // Predicated region
    $region34: #{tpu_custom_call.1} parent=1 // pred_check
      _
    $region35: #{tpu_custom_call.1} parent=1 // pred_check_branch
      %191 = sbr.rel (0) target = $region37
    $region36: #{tpu_custom_call.1} parent=1 // pred_region
      %s192 = sadd.s32 0, 0
      %s194 = ssub.s32 64, 64
      %195 = vsyncadd [#allocation5], %s194
      %s196 = smul.addr %s192, 64
      %s197 = scalar_lea.hbm %s4, %s196
      %s199 = sshll.u32 [#allocation8], 4
      %s200 = int_to_ptr.vmem [resolvable:$true] %s199
      %202 = dma.vmem_to_hbm [thread:$0]  %s200, 64, %s197, [#allocation5]
    $region37: #{tpu_custom_call.1} parent=1 // pred_fallthru
      _
    // Predicated region
    $region38: #{tpu_custom_call.1} parent=1 // pred_check
      _
    $region39: #{tpu_custom_call.1} parent=1 // pred_check_branch
      %204 = sbr.rel (0) target = $region41
    $region40: #{tpu_custom_call.1} parent=1 // pred_region
      %s206 = ssub.s32 128, 128
      %207 = vsyncadd [#allocation10], %s206
      %s209 = sshll.u32 [#allocation9], 4
      %s210 = int_to_ptr.vmem [resolvable:$true] %s209
      %212 = dma.vmem_to_hbm [thread:$0]  %s210, 128, %s5, [#allocation10]
    $region41: #{tpu_custom_call.1} parent=1 // pred_fallthru
      _
    // Predicated region
    $region42: #{tpu_custom_call.1} parent=1 // pred_check
      _
    $region43: #{tpu_custom_call.1} parent=1 // pred_check_branch
      %214 = sbr.rel (0) target = $region45
    $region44: #{tpu_custom_call.1} parent=1 // pred_region
      %215 = dma.done [#allocation5], 64
    $region45: #{tpu_custom_call.1} parent=1 // pred_fallthru
      _
    // Predicated region
    $region46: #{tpu_custom_call.1} parent=1 // pred_check
      _
    $region47: #{tpu_custom_call.1} parent=1 // pred_check_branch
      %217 = sbr.rel (0) target = $region49
    $region48: #{tpu_custom_call.1} parent=1 // pred_region
      %218 = dma.done [#allocation10], 128
    $region49: #{tpu_custom_call.1} parent=1 // pred_fallthru
      _
    %219 = vsyncpa [#allocation4], 1
    %220 = vsyncpa [#allocation7], 1
    %221 = vsyncpa [#allocation5], 1
    %222 = vsyncpa [#allocation10], 1

</llo_original>
